<compile_context>
chip_gen: v6e
topology: v6e:2x2x1
jax: 0.10.0
libtpu: 0.0.40
codegen_flags: <defaults>
</compile_context>

<pallas_src>
import numpy as np
import jax
import jax.numpy as jnp
from jax.experimental import pallas as pl
from jax.experimental.pallas import tpu as pltpu

LANE = 128
EPS = 1e-5


def _round_up(x, m):
    return ((x + m - 1) // m) * m


def _mlp_kernel(x_ref, w1, w2, w3, w4, w5, b_ref, o_ref):
    """Fused 5-layer MLP: 4x (Linear -> ReLU) + final Linear, 128-lane tiles."""
    bias = b_ref[...]                       # (5, 128), VMEM-resident

    def layer(h, w_ref, row, relu):
        h = jnp.dot(h, w_ref[...], preferred_element_type=jnp.float32)
        h = h + bias[row:row + 1, :]
        return jnp.maximum(h, 0.0) if relu else h

    h = x_ref[...]                          # (TB, K_pad) f32
    h = layer(h, w1, 0, True)
    h = layer(h, w2, 1, True)
    h = layer(h, w3, 2, True)
    h = layer(h, w4, 3, True)
    o_ref[...] = layer(h, w5, 4, False).astype(o_ref.dtype)


def communication_net_forward(x, packed, *, tb=512):
    """x: (B, input_size) f32.  packed: (padded weight list, (5,128) bias pack)."""
    ws, bias_pack = packed
    B, K = x.shape
    k_pad = ws[0].shape[0]
    assert k_pad == _round_up(K, LANE)

    tb_eff = _round_up(min(tb, _round_up(B, 8)), 8)
    b_pad = _round_up(B, tb_eff)

    x_pad = jnp.zeros((b_pad, k_pad), jnp.float32).at[:B, :K].set(x)

    const_spec = lambda arr: pl.BlockSpec(arr.shape, lambda i: (0, 0))

    flops = 2 * b_pad * (k_pad * LANE + 4 * LANE * LANE)
    bytes_accessed = 4 * (x_pad.size + sum(w.size for w in ws)
                          + bias_pack.size + b_pad * LANE)

    out = pl.pallas_call(
        _mlp_kernel,
        out_shape=jax.ShapeDtypeStruct((b_pad, LANE), jnp.float32),
        grid=(b_pad // tb_eff,),
        in_specs=[pl.BlockSpec((tb_eff, k_pad), lambda i: (i, 0))]
                 + [const_spec(w) for w in ws]
                 + [const_spec(bias_pack)],
        out_specs=pl.BlockSpec((tb_eff, LANE), lambda i: (i, 0)),
        compiler_params=pltpu.CompilerParams(
            dimension_semantics=("parallel",),
            vmem_limit_bytes=32 * 1024 * 1024),
        cost_estimate=pl.CostEstimate(
            flops=flops, transcendentals=0, bytes_accessed=bytes_accessed),
    )(x_pad, *ws, bias_pack)
    return out[:B, :2]


def init_raw_params(key, input_size, hidden_size=128, num_layers=4):
    """PyTorch-style Linear init; BN params/running stats randomized so the
    eval-mode BN fold is actually exercised (defaults would make s~1, t=0)."""
    sizes = [input_size, hidden_size]
    for i in range(num_layers - 1):
        sizes.append(hidden_size // 2 ** (i + 1))
    sizes.append(2)                         # [in, 128, 64, 32, 16, 2]

    raw = []
    for li, (fan_in, fan_out) in enumerate(zip(sizes[:-1], sizes[1:])):
        key, kw, kb, k1, k2, k3, k4 = jax.random.split(key, 7)
        bound = 1.0 / np.sqrt(fan_in)
        layer = {
            "W": jax.random.uniform(kw, (fan_in, fan_out), jnp.float32, -bound, bound),
            "b": jax.random.uniform(kb, (fan_out,), jnp.float32, -bound, bound),
        }
        if li < len(sizes) - 2:             # every hidden layer carries a BN
            layer["gamma"] = jax.random.uniform(k1, (fan_out,), jnp.float32, 0.5, 1.5)
            layer["beta"] = 0.1 * jax.random.normal(k2, (fan_out,), jnp.float32)
            layer["mean"] = 0.1 * jax.random.normal(k3, (fan_out,), jnp.float32)
            layer["var"] = jax.random.uniform(k4, (fan_out,), jnp.float32, 0.5, 1.5)
        raw.append(layer)
    return raw


def pack_params(raw, input_size):
    """Fold eval-mode BN into the next Linear, zero-pad everything to 128
    lanes, pack the 5 folded biases into one (5,128) array."""
    folded = []
    W, b = raw[0]["W"], raw[0]["b"]
    for li in range(len(raw) - 1):
        s = raw[li]["gamma"] / jnp.sqrt(raw[li]["var"] + EPS)
        t = raw[li]["beta"] - raw[li]["mean"] * s
        folded.append((W, b))
        nW, nb = raw[li + 1]["W"], raw[li + 1]["b"]
        W = nW * s[:, None]                 # diag(s) @ W_next
        b = nb + t @ nW                     # b_next + t @ W_next
    folded.append((W, b))

    k_pad = _round_up(input_size, LANE)
    ws, bs = [], []
    for li, (Wf, bf) in enumerate(folded):
        kin = k_pad if li == 0 else LANE
        Wp = jnp.zeros((kin, LANE), jnp.float32).at[:Wf.shape[0], :Wf.shape[1]].set(Wf)
        bp = jnp.zeros((LANE,), jnp.float32).at[:bf.shape[0]].set(bf)
        ws.append(Wp)
        bs.append(bp)
    bias_pack = jnp.stack(bs, axis=0)       # (5, 128)
    return ws, bias_pack


def reference_forward(x, raw):
    """Pure-JAX eval-mode reference (unfused): Linear->ReLU->BN->Dropout(id)."""
    h = x
    for layer in raw[:-1]:
        h = jnp.maximum(h @ layer["W"] + layer["b"], 0.0)
        s = layer["gamma"] / jnp.sqrt(layer["var"] + EPS)
        h = h * s + (layer["beta"] - layer["mean"] * s)
        # Dropout: identity in eval mode.
    return h @ raw[-1]["W"] + raw[-1]["b"]


if __name__ == "__main__":
    key = jax.random.PRNGKey(0)
    k_x, k_p = jax.random.split(key)

    batch = 8
    input_size = 32
    x = jax.random.normal(k_x, (batch, input_size), jnp.float32)

    raw = init_raw_params(k_p, input_size, hidden_size=128, num_layers=4)
    packed = pack_params(raw, input_size)

    out = communication_net_forward(x, packed)
    out = jax.block_until_ready(out)

    ref = reference_forward(x, raw)
    np.testing.assert_allclose(np.asarray(out), np.asarray(ref),
                               rtol=1e-4, atol=1e-4)
    assert out.shape == (batch, 2)
    print("KERNEL_OK")
</pallas_src>

<mosaic_0001>
module attributes {stable_mosaic.version = 11 : i64} {
  func.func @_mlp_kernel(%arg0: i32, %arg1: memref<8x128xf32, #tpu.memory_space<vmem>>, %arg2: memref<128x128xf32, #tpu.memory_space<vmem>>, %arg3: memref<128x128xf32, #tpu.memory_space<vmem>>, %arg4: memref<128x128xf32, #tpu.memory_space<vmem>>, %arg5: memref<128x128xf32, #tpu.memory_space<vmem>>, %arg6: memref<128x128xf32, #tpu.memory_space<vmem>>, %arg7: memref<5x128xf32, #tpu.memory_space<vmem>>, %arg8: memref<8x128xf32, #tpu.memory_space<vmem>>) attributes {dimension_semantics = [#tpu.dimension_semantics<parallel>], iteration_bounds = array<i64: 1>, scalar_prefetch = 0 : i64, scratch_operands = 0 : i64, tpu.core_type = #tpu.core_type<tc>, window_params = [{transform_indices = @transform_0, window_bounds = array<i64: 8, 128>}, {pipeline_mode = #tpu.pipeline_mode<synchronous>, transform_indices = @transform_1, window_bounds = array<i64: 128, 128>}, {pipeline_mode = #tpu.pipeline_mode<synchronous>, transform_indices = @transform_2, window_bounds = array<i64: 128, 128>}, {pipeline_mode = #tpu.pipeline_mode<synchronous>, transform_indices = @transform_3, window_bounds = array<i64: 128, 128>}, {pipeline_mode = #tpu.pipeline_mode<synchronous>, transform_indices = @transform_4, window_bounds = array<i64: 128, 128>}, {pipeline_mode = #tpu.pipeline_mode<synchronous>, transform_indices = @transform_5, window_bounds = array<i64: 128, 128>}, {pipeline_mode = #tpu.pipeline_mode<synchronous>, transform_indices = @transform_6, window_bounds = array<i64: 5, 128>}, {transform_indices = @transform_7, window_bounds = array<i64: 8, 128>}]} {
    %c0 = arith.constant 0 : index
    %c0_0 = arith.constant 0 : index
    %0 = vector.load %arg7[%c0, %c0_0] : memref<5x128xf32, #tpu.memory_space<vmem>>, vector<5x128xf32>
    %c0_1 = arith.constant 0 : index
    %c0_2 = arith.constant 0 : index
    %1 = vector.load %arg1[%c0_1, %c0_2] : memref<8x128xf32, #tpu.memory_space<vmem>>, vector<8x128xf32>
    %c0_3 = arith.constant 0 : index
    %c0_4 = arith.constant 0 : index
    %2 = vector.load %arg2[%c0_3, %c0_4] : memref<128x128xf32, #tpu.memory_space<vmem>>, vector<128x128xf32>
    %cst = arith.constant dense<0.000000e+00> : vector<8x128xf32>
    %3 = tpu.matmul %1, %2, %cst {dimension_numbers = #tpu.dot_dimension_numbers<[1], [0], [0], [1], [0, 0, 1, 1], [], []>} : vector<8x128xf32>, vector<128x128xf32>, vector<8x128xf32> -> vector<8x128xf32>
    %4 = vector.extract_strided_slice %0 {offsets = [0, 0], sizes = [1, 128], strides = [1, 1]} : vector<5x128xf32> to vector<1x128xf32>
    %5 = vector.broadcast %4 : vector<1x128xf32> to vector<8x128xf32>
    %6 = arith.addf %3, %5 : vector<8x128xf32>
    %cst_5 = arith.constant 0.000000e+00 : f32
    %7 = vector.broadcast %cst_5 : f32 to vector<8x128xf32>
    %8 = arith.maximumf %6, %7 : vector<8x128xf32>
    %c0_6 = arith.constant 0 : index
    %c0_7 = arith.constant 0 : index
    %9 = vector.load %arg3[%c0_6, %c0_7] : memref<128x128xf32, #tpu.memory_space<vmem>>, vector<128x128xf32>
    %cst_8 = arith.constant dense<0.000000e+00> : vector<8x128xf32>
    %10 = tpu.matmul %8, %9, %cst_8 {dimension_numbers = #tpu.dot_dimension_numbers<[1], [0], [0], [1], [0, 0, 1, 1], [], []>} : vector<8x128xf32>, vector<128x128xf32>, vector<8x128xf32> -> vector<8x128xf32>
    %11 = vector.extract_strided_slice %0 {offsets = [1, 0], sizes = [1, 128], strides = [1, 1]} : vector<5x128xf32> to vector<1x128xf32>
    %12 = vector.broadcast %11 : vector<1x128xf32> to vector<8x128xf32>
    %13 = arith.addf %10, %12 : vector<8x128xf32>
    %cst_9 = arith.constant 0.000000e+00 : f32
    %14 = vector.broadcast %cst_9 : f32 to vector<8x128xf32>
    %15 = arith.maximumf %13, %14 : vector<8x128xf32>
    %c0_10 = arith.constant 0 : index
    %c0_11 = arith.constant 0 : index
    %16 = vector.load %arg4[%c0_10, %c0_11] : memref<128x128xf32, #tpu.memory_space<vmem>>, vector<128x128xf32>
    %cst_12 = arith.constant dense<0.000000e+00> : vector<8x128xf32>
    %17 = tpu.matmul %15, %16, %cst_12 {dimension_numbers = #tpu.dot_dimension_numbers<[1], [0], [0], [1], [0, 0, 1, 1], [], []>} : vector<8x128xf32>, vector<128x128xf32>, vector<8x128xf32> -> vector<8x128xf32>
    %18 = vector.extract_strided_slice %0 {offsets = [2, 0], sizes = [1, 128], strides = [1, 1]} : vector<5x128xf32> to vector<1x128xf32>
    %19 = vector.broadcast %18 : vector<1x128xf32> to vector<8x128xf32>
    %20 = arith.addf %17, %19 : vector<8x128xf32>
    %cst_13 = arith.constant 0.000000e+00 : f32
    %21 = vector.broadcast %cst_13 : f32 to vector<8x128xf32>
    %22 = arith.maximumf %20, %21 : vector<8x128xf32>
    %c0_14 = arith.constant 0 : index
    %c0_15 = arith.constant 0 : index
    %23 = vector.load %arg5[%c0_14, %c0_15] : memref<128x128xf32, #tpu.memory_space<vmem>>, vector<128x128xf32>
    %cst_16 = arith.constant dense<0.000000e+00> : vector<8x128xf32>
    %24 = tpu.matmul %22, %23, %cst_16 {dimension_numbers = #tpu.dot_dimension_numbers<[1], [0], [0], [1], [0, 0, 1, 1], [], []>} : vector<8x128xf32>, vector<128x128xf32>, vector<8x128xf32> -> vector<8x128xf32>
    %25 = vector.extract_strided_slice %0 {offsets = [3, 0], sizes = [1, 128], strides = [1, 1]} : vector<5x128xf32> to vector<1x128xf32>
    %26 = vector.broadcast %25 : vector<1x128xf32> to vector<8x128xf32>
    %27 = arith.addf %24, %26 : vector<8x128xf32>
    %cst_17 = arith.constant 0.000000e+00 : f32
    %28 = vector.broadcast %cst_17 : f32 to vector<8x128xf32>
    %29 = arith.maximumf %27, %28 : vector<8x128xf32>
    %c0_18 = arith.constant 0 : index
    %c0_19 = arith.constant 0 : index
    %30 = vector.load %arg6[%c0_18, %c0_19] : memref<128x128xf32, #tpu.memory_space<vmem>>, vector<128x128xf32>
    %cst_20 = arith.constant dense<0.000000e+00> : vector<8x128xf32>
    %31 = tpu.matmul %29, %30, %cst_20 {dimension_numbers = #tpu.dot_dimension_numbers<[1], [0], [0], [1], [0, 0, 1, 1], [], []>} : vector<8x128xf32>, vector<128x128xf32>, vector<8x128xf32> -> vector<8x128xf32>
    %32 = vector.extract_strided_slice %0 {offsets = [4, 0], sizes = [1, 128], strides = [1, 1]} : vector<5x128xf32> to vector<1x128xf32>
    %33 = vector.broadcast %32 : vector<1x128xf32> to vector<8x128xf32>
    %34 = arith.addf %31, %33 : vector<8x128xf32>
    %c0_21 = arith.constant 0 : index
    %c0_22 = arith.constant 0 : index
    %35 = vector.load %arg8[%c0_21, %c0_22] : memref<8x128xf32, #tpu.memory_space<vmem>>, vector<8x128xf32>
    tpu.vector_store %arg8[%c0_21, %c0_22], %34 {strides = array<i32>} : memref<8x128xf32, #tpu.memory_space<vmem>>, vector<8x128xf32>,
    return
  }
  func.func @transform_0(%arg0: i32) -> (i32, i32) {
    %c0_i32 = arith.constant 0 : i32
    %c0_i32_0 = arith.constant 0 : i32
    return %arg0, %c0_i32 : i32, i32
  }
  func.func @transform_1(%arg0: i32) -> (i32, i32) {
    %c0_i32 = arith.constant 0 : i32
    %c0_i32_0 = arith.constant 0 : i32
    %c0_i32_1 = arith.constant 0 : i32
    return %c0_i32, %c0_i32_0 : i32, i32
  }
  func.func @transform_2(%arg0: i32) -> (i32, i32) {
    %c0_i32 = arith.constant 0 : i32
    %c0_i32_0 = arith.constant 0 : i32
    %c0_i32_1 = arith.constant 0 : i32
    return %c0_i32, %c0_i32_0 : i32, i32
  }
  func.func @transform_3(%arg0: i32) -> (i32, i32) {
    %c0_i32 = arith.constant 0 : i32
    %c0_i32_0 = arith.constant 0 : i32
    %c0_i32_1 = arith.constant 0 : i32
    return %c0_i32, %c0_i32_0 : i32, i32
  }
  func.func @transform_4(%arg0: i32) -> (i32, i32) {
    %c0_i32 = arith.constant 0 : i32
    %c0_i32_0 = arith.constant 0 : i32
    %c0_i32_1 = arith.constant 0 : i32
    return %c0_i32, %c0_i32_0 : i32, i32
  }
  func.func @transform_5(%arg0: i32) -> (i32, i32) {
    %c0_i32 = arith.constant 0 : i32
    %c0_i32_0 = arith.constant 0 : i32
    %c0_i32_1 = arith.constant 0 : i32
    return %c0_i32, %c0_i32_0 : i32, i32
  }
  func.func @transform_6(%arg0: i32) -> (i32, i32) {
    %c0_i32 = arith.constant 0 : i32
    %c0_i32_0 = arith.constant 0 : i32
    %c0_i32_1 = arith.constant 0 : i32
    return %c0_i32, %c0_i32_0 : i32, i32
  }
  func.func @transform_7(%arg0: i32) -> (i32, i32) {
    %c0_i32 = arith.constant 0 : i32
    %c0_i32_0 = arith.constant 0 : i32
    return %arg0, %c0_i32 : i32, i32
  }
}

</mosaic_0001>

<llo_original>
// kernel: tpu_custom_call.1
$region0: #{tpu_custom_call.1}
  #allocation0 [shape = 'u32[]', space=smem, size = 0x4, offset = 0x4, fixed_abs, tag = 'smem constant byte address 0x4 - core index']
  #allocation1 [shape = 'u32[144,128]{1,0:T(1,128)}', space=vmem, size = 0x12000, scoped, tag = 'internal scratch']
  %s0 = inlined_call_operand.hbm [shape: f32[8,128], index: 0, kind: input, shape index: {}]
  %s1 = inlined_call_operand.hbm [shape: f32[128,128], index: 1, kind: input, shape index: {}]
  %s2 = inlined_call_operand.hbm [shape: f32[128,128], index: 2, kind: input, shape index: {}]
  %s3 = inlined_call_operand.hbm [shape: f32[128,128], index: 3, kind: input, shape index: {}]
  %s4 = inlined_call_operand.hbm [shape: f32[128,128], index: 4, kind: input, shape index: {}]
  %s5 = inlined_call_operand.hbm [shape: f32[128,128], index: 5, kind: input, shape index: {}]
  %s6 = inlined_call_operand.vmem [shape: f32[5,128], index: 6, kind: input, shape index: {}]
  %s7 = inlined_call_operand.hbm [shape: f32[8,128], index: 7, kind: output, shape index: {}]
  %s8 = sld [smem:[#allocation0]]
  $region62: #{tpu_custom_call.1} parent=0
    _
  %s10 = ssub.s32 1, %s8
  %s11 = scalar_select 0, %s10, %s8
  $region1: #{tpu_custom_call.1} parent=0
    #allocation2 [shape = 'u8[4096]{0}', space=vmem, size = 0x1000, scoped, tag = 'input window, operand 0, single buffered']
    #allocation3 [shape = 's32[1]{0}', space=sflag, size = 0x4, scoped, tag = 'scoped memory for tpu_custom_call.1']
    #allocation4 [shape = 's32[1]{0}', space=sflag, size = 0x4, scoped, tag = 'scoped memory for tpu_custom_call.1']
    #allocation5 [shape = 'u8[65536]{0}', space=vmem, size = 0x10000, scoped, tag = 'input window, operand 1, single buffered']
    #allocation6 [shape = 's32[1]{0}', space=sflag, size = 0x4, scoped, tag = 'scoped memory for tpu_custom_call.1']
    #allocation7 [shape = 'u8[65536]{0}', space=vmem, size = 0x10000, scoped, tag = 'input window, operand 2, single buffered']
    #allocation8 [shape = 'u8[65536]{0}', space=vmem, size = 0x10000, scoped, tag = 'input window, operand 3, single buffered']
    #allocation9 [shape = 's32[1]{0}', space=sflag, size = 0x4, scoped, tag = 'scoped memory for tpu_custom_call.1']
    #allocation10 [shape = 'u8[65536]{0}', space=vmem, size = 0x10000, scoped, tag = 'input window, operand 4, single buffered']
    #allocation11 [shape = 'u8[65536]{0}', space=vmem, size = 0x10000, scoped, tag = 'input window, operand 5, single buffered']
    #allocation12 [shape = 's32[1]{0}', space=sflag, size = 0x4, scoped, tag = 'scoped memory for tpu_custom_call.1']
    #allocation13 [shape = 'u8[4096]{0}', space=vmem, size = 0x1000, scoped, tag = 'output window, operand 0, single buffered']
    %12 = vsyncpa [#allocation3], 0
    %13 = vsyncpa [#allocation6], 0
    %14 = vsyncpa [#allocation9], 0
    %15 = vsyncpa [#allocation12], 0
    %16 = vsyncpa [#allocation4], 0
    // Predicated region
    $region2: #{tpu_custom_call.1} parent=1 // pred_check
      _
    $region3: #{tpu_custom_call.1} parent=1 // pred_check_branch
      %18 = sbr.rel (0) target = $region5
    $region4: #{tpu_custom_call.1} parent=1 // pred_region
      %s20 = ssub.s32 128, 128
      %21 = vsyncadd [#allocation3], %s20
      %s23 = sshll.u32 [#allocation2], 4
      %s24 = int_to_ptr.vmem [resolvable:$true] %s23
      %26 = dma.hbm_to_vmem [thread:$0]  %s0, 128, %s24, [#allocation3]
    $region5: #{tpu_custom_call.1} parent=1 // pred_fallthru
      _
    // Predicated region
    $region6: #{tpu_custom_call.1} parent=1 // pred_check
      _
    $region7: #{tpu_custom_call.1} parent=1 // pred_check_branch
      %28 = sbr.rel (0) target = $region9
    $region8: #{tpu_custom_call.1} parent=1 // pred_region
      %s30 = ssub.s32 2048, 2048
      %31 = vsyncadd [#allocation6], %s30
      %s32 = sshll.u32 [#allocation5], 4
      %s33 = int_to_ptr.vmem [resolvable:$true] %s32
      %38 = dma.hbm_to_vmem [thread:$0]  %s1, 2048, %s33, [#allocation6], 128, 128, 8
    $region9: #{tpu_custom_call.1} parent=1 // pred_fallthru
      _
    // Predicated region
    $region10: #{tpu_custom_call.1} parent=1 // pred_check
      _
    $region11: #{tpu_custom_call.1} parent=1 // pred_check_branch
      %40 = sbr.rel (0) target = $region13
    $region12: #{tpu_custom_call.1} parent=1 // pred_region
      %s42 = ssub.s32 2048, 2048
      %43 = vsyncadd [#allocation6], %s42
      %s44 = sshll.u32 [#allocation7], 4
      %s45 = int_to_ptr.vmem [resolvable:$true] %s44
      %50 = dma.hbm_to_vmem [thread:$0]  %s2, 2048, %s45, [#allocation6], 128, 128, 8
    $region13: #{tpu_custom_call.1} parent=1 // pred_fallthru
      _
    // Predicated region
    $region14: #{tpu_custom_call.1} parent=1 // pred_check
      _
    $region15: #{tpu_custom_call.1} parent=1 // pred_check_branch
      %52 = sbr.rel (0) target = $region17
    $region16: #{tpu_custom_call.1} parent=1 // pred_region
      %s54 = ssub.s32 2048, 2048
      %55 = vsyncadd [#allocation9], %s54
      %s56 = sshll.u32 [#allocation8], 4
      %s57 = int_to_ptr.vmem [resolvable:$true] %s56
      %62 = dma.hbm_to_vmem [thread:$0]  %s3, 2048, %s57, [#allocation9], 128, 128, 8
    $region17: #{tpu_custom_call.1} parent=1 // pred_fallthru
      _
    // Predicated region
    $region18: #{tpu_custom_call.1} parent=1 // pred_check
      _
    $region19: #{tpu_custom_call.1} parent=1 // pred_check_branch
      %64 = sbr.rel (0) target = $region21
    $region20: #{tpu_custom_call.1} parent=1 // pred_region
      %s66 = ssub.s32 2048, 2048
      %67 = vsyncadd [#allocation9], %s66
      %s68 = sshll.u32 [#allocation10], 4
      %s69 = int_to_ptr.vmem [resolvable:$true] %s68
      %74 = dma.hbm_to_vmem [thread:$0]  %s4, 2048, %s69, [#allocation9], 128, 128, 8
    $region21: #{tpu_custom_call.1} parent=1 // pred_fallthru
      _
    // Predicated region
    $region22: #{tpu_custom_call.1} parent=1 // pred_check
      _
    $region23: #{tpu_custom_call.1} parent=1 // pred_check_branch
      %76 = sbr.rel (0) target = $region25
    $region24: #{tpu_custom_call.1} parent=1 // pred_region
      %s78 = ssub.s32 2048, 2048
      %79 = vsyncadd [#allocation12], %s78
      %s80 = sshll.u32 [#allocation11], 4
      %s81 = int_to_ptr.vmem [resolvable:$true] %s80
      %86 = dma.hbm_to_vmem [thread:$0]  %s5, 2048, %s81, [#allocation12], 128, 128, 8
    $region25: #{tpu_custom_call.1} parent=1 // pred_fallthru
      _
    // Predicated region
    $region26: #{tpu_custom_call.1} parent=1 // pred_check
      _
    $region27: #{tpu_custom_call.1} parent=1 // pred_check_branch
      %88 = sbr.rel (0) target = $region29
    $region28: #{tpu_custom_call.1} parent=1 // pred_region
      _
    $region29: #{tpu_custom_call.1} parent=1 // pred_fallthru
      _
    // Predicated region
    $region30: #{tpu_custom_call.1} parent=1 // pred_check
      _
    $region31: #{tpu_custom_call.1} parent=1 // pred_check_branch
      %90 = sbr.rel (0) target = $region33
    $region32: #{tpu_custom_call.1} parent=1 // pred_region
      %91 = dma.done [#allocation3], 128
    $region33: #{tpu_custom_call.1} parent=1 // pred_fallthru
      _
    // Predicated region
    $region34: #{tpu_custom_call.1} parent=1 // pred_check
      _
    $region35: #{tpu_custom_call.1} parent=1 // pred_check_branch
      %93 = sbr.rel (0) target = $region37
    $region36: #{tpu_custom_call.1} parent=1 // pred_region
      %94 = dma.done [#allocation6], 2048
    $region37: #{tpu_custom_call.1} parent=1 // pred_fallthru
      _
    // Predicated region
    $region38: #{tpu_custom_call.1} parent=1 // pred_check
      _
    $region39: #{tpu_custom_call.1} parent=1 // pred_check_branch
      %96 = sbr.rel (0) target = $region41
    $region40: #{tpu_custom_call.1} parent=1 // pred_region
      %97 = dma.done [#allocation6], 2048
    $region41: #{tpu_custom_call.1} parent=1 // pred_fallthru
      _
    // Predicated region
    $region42: #{tpu_custom_call.1} parent=1 // pred_check
      _
    $region43: #{tpu_custom_call.1} parent=1 // pred_check_branch
      %99 = sbr.rel (0) target = $region45
    $region44: #{tpu_custom_call.1} parent=1 // pred_region
      %100 = dma.done [#allocation9], 2048
    $region45: #{tpu_custom_call.1} parent=1 // pred_fallthru
      _
    // Predicated region
    $region46: #{tpu_custom_call.1} parent=1 // pred_check
      _
    $region47: #{tpu_custom_call.1} parent=1 // pred_check_branch
      %102 = sbr.rel (0) target = $region49
    $region48: #{tpu_custom_call.1} parent=1 // pred_region
      %103 = dma.done [#allocation9], 2048
    $region49: #{tpu_custom_call.1} parent=1 // pred_fallthru
      _
    // Predicated region
    $region50: #{tpu_custom_call.1} parent=1 // pred_check
      _
    $region51: #{tpu_custom_call.1} parent=1 // pred_check_branch
      %105 = sbr.rel (0) target = $region53
    $region52: #{tpu_custom_call.1} parent=1 // pred_region
      %106 = dma.done [#allocation12], 2048
    $region53: #{tpu_custom_call.1} parent=1 // pred_fallthru
      _
    %v107 = vld [vmem:[%s6] sm:$0x1f]
    %v108 = vld [vmem:[#allocation2] sm:$0xff]
    %v109 = vld [vmem:[#allocation5] sm:$0xff]
    %v110 = vld [vmem:[#allocation5 + $0x8] sm:$0xff]
    %v111 = vld [vmem:[#allocation5 + $0x10] sm:$0xff]
    %v112 = vld [vmem:[#allocation5 + $0x18] sm:$0xff]
    %v113 = vld [vmem:[#allocation5 + $0x20] sm:$0xff]
    %v114 = vld [vmem:[#allocation5 + $0x28] sm:$0xff]
    %v115 = vld [vmem:[#allocation5 + $0x30] sm:$0xff]
    %v116 = vld [vmem:[#allocation5 + $0x38] sm:$0xff]
    %v117 = vld [vmem:[#allocation5 + $0x40] sm:$0xff]
    %v118 = vld [vmem:[#allocation5 + $0x48] sm:$0xff]
    %v119 = vld [vmem:[#allocation5 + $0x50] sm:$0xff]
    %v120 = vld [vmem:[#allocation5 + $0x58] sm:$0xff]
    %v121 = vld [vmem:[#allocation5 + $0x60] sm:$0xff]
    %v122 = vld [vmem:[#allocation5 + $0x68] sm:$0xff]
    %v123 = vld [vmem:[#allocation5 + $0x70] sm:$0xff]
    %v124 = vld [vmem:[#allocation5 + $0x78] sm:$0xff]
    %v125 = vlaneseq
    %v126 = vshrl.u32 %v125, 7
    %v127 = vsub.s32 0, %v126
    %v128 = vrot.slane %v107, %v127
    %129 = vmatprep.subr.mxu0 0.0
    %130 = vmatpush1.msra.mxu0 %v124
    %131 = vmatprep.subr.mxu0 0.0
    %132 = vmatpush1.msra.mxu0 %v123
    %133 = vmatprep.subr.mxu0 0.0
    %134 = vmatpush1.msra.mxu0 %v122
    %135 = vmatprep.subr.mxu0 0.0
    %136 = vmatpush1.msra.mxu0 %v121
    %137 = vmatprep.subr.mxu0 0.0
    %138 = vmatpush1.msra.mxu0 %v120
    %139 = vmatprep.subr.mxu0 0.0
    %140 = vmatpush1.msra.mxu0 %v119
    %141 = vmatprep.subr.mxu0 0.0
    %142 = vmatpush1.msra.mxu0 %v118
    %143 = vmatprep.subr.mxu0 0.0
    %144 = vmatpush1.msra.mxu0 %v117
    %145 = vmatprep.subr.mxu0 0.0
    %146 = vmatpush1.msra.mxu0 %v116
    %147 = vmatprep.subr.mxu0 0.0
    %148 = vmatpush1.msra.mxu0 %v115
    %149 = vmatprep.subr.mxu0 0.0
    %150 = vmatpush1.msra.mxu0 %v114
    %151 = vmatprep.subr.mxu0 0.0
    %152 = vmatpush1.msra.mxu0 %v113
    %153 = vmatprep.subr.mxu0 0.0
    %154 = vmatpush1.msra.mxu0 %v112
    %155 = vmatprep.subr.mxu0 0.0
    %156 = vmatpush1.msra.mxu0 %v111
    %157 = vmatprep.subr.mxu0 0.0
    %158 = vmatpush1.msra.mxu0 %v110
    %159 = vmatprep.subr.mxu0 0.0
    %160 = vmatpush1.msra.mxu0 %v109
    %161 = vmatprep.subr.mxu0 0.0
    %162 = vmatpush2.msra.mxu0 0.0
    %163 = vmatprep.subr.mxu0 0.0
    %164 = vmatpush2.msra.mxu0 0.0
    %165 = vmatprep.subr.mxu0 0.0
    %166 = vmatpush2.msra.mxu0 0.0
    %167 = vmatprep.subr.mxu0 0.0
    %168 = vmatpush2.msra.mxu0 0.0
    %169 = vmatprep.subr.mxu0 0.0
    %170 = vmatpush2.msra.mxu0 0.0
    %171 = vmatprep.subr.mxu0 0.0
    %172 = vmatpush2.msra.mxu0 0.0
    %173 = vmatprep.subr.mxu0 0.0
    %174 = vmatpush2.msra.mxu0 0.0
    %175 = vmatprep.subr.mxu0 0.0
    %176 = vmatpush2.msra.mxu0 0.0
    %177 = vmatprep.subr.mxu0 0.0
    %178 = vmatpush2.msra.mxu0 0.0
    %179 = vmatprep.subr.mxu0 0.0
    %180 = vmatpush2.msra.mxu0 0.0
    %181 = vmatprep.subr.mxu0 0.0
    %182 = vmatpush2.msra.mxu0 0.0
    %183 = vmatprep.subr.mxu0 0.0
    %184 = vmatpush2.msra.mxu0 0.0
    %185 = vmatprep.subr.mxu0 0.0
    %186 = vmatpush2.msra.mxu0 0.0
    %187 = vmatprep.subr.mxu0 0.0
    %188 = vmatpush2.msra.mxu0 0.0
    %189 = vmatprep.subr.mxu0 0.0
    %190 = vmatpush2.msra.mxu0 0.0
    %191 = vmatprep.subr.mxu0 0.0
    %192 = vmatpush2.msra.mxu0 0.0
    %193 = vmatprep.mubr.f32.mxu0 0.0
    %194 = vmatmul.mubr.f32.gmra.mxu0 %v108
    %v195 = vpop.f32.mrf.mxu0
    %v196 = vadd.f32 %v128, %v195
    %v197 = vpop.f32.mrf.mxu0
    %198 = vdwg.mxu0
    %v199 = vmax.f32 %v196, 0.0
    %v200 = vld [vmem:[#allocation7] sm:$0xff]
    %v201 = vld [vmem:[#allocation7 + $0x8] sm:$0xff]
    %v202 = vld [vmem:[#allocation7 + $0x10] sm:$0xff]
    %v203 = vld [vmem:[#allocation7 + $0x18] sm:$0xff]
    %v204 = vld [vmem:[#allocation7 + $0x20] sm:$0xff]
    %v205 = vld [vmem:[#allocation7 + $0x28] sm:$0xff]
    %v206 = vld [vmem:[#allocation7 + $0x30] sm:$0xff]
    %v207 = vld [vmem:[#allocation7 + $0x38] sm:$0xff]
    %v208 = vld [vmem:[#allocation7 + $0x40] sm:$0xff]
    %v209 = vld [vmem:[#allocation7 + $0x48] sm:$0xff]
    %v210 = vld [vmem:[#allocation7 + $0x50] sm:$0xff]
    %v211 = vld [vmem:[#allocation7 + $0x58] sm:$0xff]
    %v212 = vld [vmem:[#allocation7 + $0x60] sm:$0xff]
    %v213 = vld [vmem:[#allocation7 + $0x68] sm:$0xff]
    %v214 = vld [vmem:[#allocation7 + $0x70] sm:$0xff]
    %v215 = vld [vmem:[#allocation7 + $0x78] sm:$0xff]
    %v216 = vlaneseq
    %v217 = vshrl.u32 %v216, 7
    %v218 = vsub.s32 1, %v217
    %v219 = vrot.slane %v107, %v218
    %220 = vmatprep.subr.mxu0 0.0
    %221 = vmatpush1.msra.mxu0 %v215
    %222 = vmatprep.subr.mxu0 0.0
    %223 = vmatpush1.msra.mxu0 %v214
    %224 = vmatprep.subr.mxu0 0.0
    %225 = vmatpush1.msra.mxu0 %v213
    %226 = vmatprep.subr.mxu0 0.0
    %227 = vmatpush1.msra.mxu0 %v212
    %228 = vmatprep.subr.mxu0 0.0
    %229 = vmatpush1.msra.mxu0 %v211
    %230 = vmatprep.subr.mxu0 0.0
    %231 = vmatpush1.msra.mxu0 %v210
    %232 = vmatprep.subr.mxu0 0.0
    %233 = vmatpush1.msra.mxu0 %v209
    %234 = vmatprep.subr.mxu0 0.0
    %235 = vmatpush1.msra.mxu0 %v208
    %236 = vmatprep.subr.mxu0 0.0
    %237 = vmatpush1.msra.mxu0 %v207
    %238 = vmatprep.subr.mxu0 0.0
    %239 = vmatpush1.msra.mxu0 %v206
    %240 = vmatprep.subr.mxu0 0.0
    %241 = vmatpush1.msra.mxu0 %v205
    %242 = vmatprep.subr.mxu0 0.0
    %243 = vmatpush1.msra.mxu0 %v204
    %244 = vmatprep.subr.mxu0 0.0
    %245 = vmatpush1.msra.mxu0 %v203
    %246 = vmatprep.subr.mxu0 0.0
    %247 = vmatpush1.msra.mxu0 %v202
    %248 = vmatprep.subr.mxu0 0.0
    %249 = vmatpush1.msra.mxu0 %v201
    %250 = vmatprep.subr.mxu0 0.0
    %251 = vmatpush1.msra.mxu0 %v200
    %252 = vmatprep.subr.mxu0 0.0
    %253 = vmatpush2.msra.mxu0 0.0
    %254 = vmatprep.subr.mxu0 0.0
    %255 = vmatpush2.msra.mxu0 0.0
    %256 = vmatprep.subr.mxu0 0.0
    %257 = vmatpush2.msra.mxu0 0.0
    %258 = vmatprep.subr.mxu0 0.0
    %259 = vmatpush2.msra.mxu0 0.0
    %260 = vmatprep.subr.mxu0 0.0
    %261 = vmatpush2.msra.mxu0 0.0
    %262 = vmatprep.subr.mxu0 0.0
    %263 = vmatpush2.msra.mxu0 0.0
    %264 = vmatprep.subr.mxu0 0.0
    %265 = vmatpush2.msra.mxu0 0.0
    %266 = vmatprep.subr.mxu0 0.0
    %267 = vmatpush2.msra.mxu0 0.0
    %268 = vmatprep.subr.mxu0 0.0
    %269 = vmatpush2.msra.mxu0 0.0
    %270 = vmatprep.subr.mxu0 0.0
    %271 = vmatpush2.msra.mxu0 0.0
    %272 = vmatprep.subr.mxu0 0.0
    %273 = vmatpush2.msra.mxu0 0.0
    %274 = vmatprep.subr.mxu0 0.0
    %275 = vmatpush2.msra.mxu0 0.0
    %276 = vmatprep.subr.mxu0 0.0
    %277 = vmatpush2.msra.mxu0 0.0
    %278 = vmatprep.subr.mxu0 0.0
    %279 = vmatpush2.msra.mxu0 0.0
    %280 = vmatprep.subr.mxu0 0.0
    %281 = vmatpush2.msra.mxu0 0.0
    %282 = vmatprep.subr.mxu0 0.0
    %283 = vmatpush2.msra.mxu0 0.0
    %284 = vmatprep.mubr.f32.mxu0 0.0
    %285 = vmatmul.mubr.f32.gmra.mxu0 %v199
    %v286 = vpop.f32.mrf.mxu0
    %v287 = vadd.f32 %v219, %v286
    %v288 = vpop.f32.mrf.mxu0
    %289 = vdwg.mxu0
    %v290 = vmax.f32 %v287, 0.0
    %v291 = vld [vmem:[#allocation8] sm:$0xff]
    %v292 = vld [vmem:[#allocation8 + $0x8] sm:$0xff]
    %v293 = vld [vmem:[#allocation8 + $0x10] sm:$0xff]
    %v294 = vld [vmem:[#allocation8 + $0x18] sm:$0xff]
    %v295 = vld [vmem:[#allocation8 + $0x20] sm:$0xff]
    %v296 = vld [vmem:[#allocation8 + $0x28] sm:$0xff]
    %v297 = vld [vmem:[#allocation8 + $0x30] sm:$0xff]
    %v298 = vld [vmem:[#allocation8 + $0x38] sm:$0xff]
    %v299 = vld [vmem:[#allocation8 + $0x40] sm:$0xff]
    %v300 = vld [vmem:[#allocation8 + $0x48] sm:$0xff]
    %v301 = vld [vmem:[#allocation8 + $0x50] sm:$0xff]
    %v302 = vld [vmem:[#allocation8 + $0x58] sm:$0xff]
    %v303 = vld [vmem:[#allocation8 + $0x60] sm:$0xff]
    %v304 = vld [vmem:[#allocation8 + $0x68] sm:$0xff]
    %v305 = vld [vmem:[#allocation8 + $0x70] sm:$0xff]
    %v306 = vld [vmem:[#allocation8 + $0x78] sm:$0xff]
    %v307 = vlaneseq
    %v308 = vshrl.u32 %v307, 7
    %v309 = vsub.s32 2, %v308
    %v310 = vrot.slane %v107, %v309
    %311 = vmatprep.subr.mxu0 0.0
    %312 = vmatpush1.msra.mxu0 %v306
    %313 = vmatprep.subr.mxu0 0.0
    %314 = vmatpush1.msra.mxu0 %v305
    %315 = vmatprep.subr.mxu0 0.0
    %316 = vmatpush1.msra.mxu0 %v304
    %317 = vmatprep.subr.mxu0 0.0
    %318 = vmatpush1.msra.mxu0 %v303
    %319 = vmatprep.subr.mxu0 0.0
    %320 = vmatpush1.msra.mxu0 %v302
    %321 = vmatprep.subr.mxu0 0.0
    %322 = vmatpush1.msra.mxu0 %v301
    %323 = vmatprep.subr.mxu0 0.0
    %324 = vmatpush1.msra.mxu0 %v300
    %325 = vmatprep.subr.mxu0 0.0
    %326 = vmatpush1.msra.mxu0 %v299
    %327 = vmatprep.subr.mxu0 0.0
    %328 = vmatpush1.msra.mxu0 %v298
    %329 = vmatprep.subr.mxu0 0.0
    %330 = vmatpush1.msra.mxu0 %v297
    %331 = vmatprep.subr.mxu0 0.0
    %332 = vmatpush1.msra.mxu0 %v296
    %333 = vmatprep.subr.mxu0 0.0
    %334 = vmatpush1.msra.mxu0 %v295
    %335 = vmatprep.subr.mxu0 0.0
    %336 = vmatpush1.msra.mxu0 %v294
    %337 = vmatprep.subr.mxu0 0.0
    %338 = vmatpush1.msra.mxu0 %v293
    %339 = vmatprep.subr.mxu0 0.0
    %340 = vmatpush1.msra.mxu0 %v292
    %341 = vmatprep.subr.mxu0 0.0
    %342 = vmatpush1.msra.mxu0 %v291
    %343 = vmatprep.subr.mxu0 0.0
    %344 = vmatpush2.msra.mxu0 0.0
    %345 = vmatprep.subr.mxu0 0.0
    %346 = vmatpush2.msra.mxu0 0.0
    %347 = vmatprep.subr.mxu0 0.0
    %348 = vmatpush2.msra.mxu0 0.0
    %349 = vmatprep.subr.mxu0 0.0
    %350 = vmatpush2.msra.mxu0 0.0
    %351 = vmatprep.subr.mxu0 0.0
    %352 = vmatpush2.msra.mxu0 0.0
    %353 = vmatprep.subr.mxu0 0.0
    %354 = vmatpush2.msra.mxu0 0.0
    %355 = vmatprep.subr.mxu0 0.0
    %356 = vmatpush2.msra.mxu0 0.0
    %357 = vmatprep.subr.mxu0 0.0
    %358 = vmatpush2.msra.mxu0 0.0
    %359 = vmatprep.subr.mxu0 0.0
    %360 = vmatpush2.msra.mxu0 0.0
    %361 = vmatprep.subr.mxu0 0.0
    %362 = vmatpush2.msra.mxu0 0.0
    %363 = vmatprep.subr.mxu0 0.0
    %364 = vmatpush2.msra.mxu0 0.0
    %365 = vmatprep.subr.mxu0 0.0
    %366 = vmatpush2.msra.mxu0 0.0
    %367 = vmatprep.subr.mxu0 0.0
    %368 = vmatpush2.msra.mxu0 0.0
    %369 = vmatprep.subr.mxu0 0.0
    %370 = vmatpush2.msra.mxu0 0.0
    %371 = vmatprep.subr.mxu0 0.0
    %372 = vmatpush2.msra.mxu0 0.0
    %373 = vmatprep.subr.mxu0 0.0
    %374 = vmatpush2.msra.mxu0 0.0
    %375 = vmatprep.mubr.f32.mxu0 0.0
    %376 = vmatmul.mubr.f32.gmra.mxu0 %v290
    %v377 = vpop.f32.mrf.mxu0
    %v378 = vadd.f32 %v310, %v377
    %v379 = vpop.f32.mrf.mxu0
    %380 = vdwg.mxu0
    %v381 = vmax.f32 %v378, 0.0
    %v382 = vld [vmem:[#allocation10] sm:$0xff]
    %v383 = vld [vmem:[#allocation10 + $0x8] sm:$0xff]
    %v384 = vld [vmem:[#allocation10 + $0x10] sm:$0xff]
    %v385 = vld [vmem:[#allocation10 + $0x18] sm:$0xff]
    %v386 = vld [vmem:[#allocation10 + $0x20] sm:$0xff]
    %v387 = vld [vmem:[#allocation10 + $0x28] sm:$0xff]
    %v388 = vld [vmem:[#allocation10 + $0x30] sm:$0xff]
    %v389 = vld [vmem:[#allocation10 + $0x38] sm:$0xff]
    %v390 = vld [vmem:[#allocation10 + $0x40] sm:$0xff]
    %v391 = vld [vmem:[#allocation10 + $0x48] sm:$0xff]
    %v392 = vld [vmem:[#allocation10 + $0x50] sm:$0xff]
    %v393 = vld [vmem:[#allocation10 + $0x58] sm:$0xff]
    %v394 = vld [vmem:[#allocation10 + $0x60] sm:$0xff]
    %v395 = vld [vmem:[#allocation10 + $0x68] sm:$0xff]
    %v396 = vld [vmem:[#allocation10 + $0x70] sm:$0xff]
    %v397 = vld [vmem:[#allocation10 + $0x78] sm:$0xff]
    %v398 = vlaneseq
    %v399 = vshrl.u32 %v398, 7
    %v400 = vsub.s32 3, %v399
    %v401 = vrot.slane %v107, %v400
    %402 = vmatprep.subr.mxu0 0.0
    %403 = vmatpush1.msra.mxu0 %v397
    %404 = vmatprep.subr.mxu0 0.0
    %405 = vmatpush1.msra.mxu0 %v396
    %406 = vmatprep.subr.mxu0 0.0
    %407 = vmatpush1.msra.mxu0 %v395
    %408 = vmatprep.subr.mxu0 0.0
    %409 = vmatpush1.msra.mxu0 %v394
    %410 = vmatprep.subr.mxu0 0.0
    %411 = vmatpush1.msra.mxu0 %v393
    %412 = vmatprep.subr.mxu0 0.0
    %413 = vmatpush1.msra.mxu0 %v392
    %414 = vmatprep.subr.mxu0 0.0
    %415 = vmatpush1.msra.mxu0 %v391
    %416 = vmatprep.subr.mxu0 0.0
    %417 = vmatpush1.msra.mxu0 %v390
    %418 = vmatprep.subr.mxu0 0.0
    %419 = vmatpush1.msra.mxu0 %v389
    %420 = vmatprep.subr.mxu0 0.0
    %421 = vmatpush1.msra.mxu0 %v388
    %422 = vmatprep.subr.mxu0 0.0
    %423 = vmatpush1.msra.mxu0 %v387
    %424 = vmatprep.subr.mxu0 0.0
    %425 = vmatpush1.msra.mxu0 %v386
    %426 = vmatprep.subr.mxu0 0.0
    %427 = vmatpush1.msra.mxu0 %v385
    %428 = vmatprep.subr.mxu0 0.0
    %429 = vmatpush1.msra.mxu0 %v384
    %430 = vmatprep.subr.mxu0 0.0
    %431 = vmatpush1.msra.mxu0 %v383
    %432 = vmatprep.subr.mxu0 0.0
    %433 = vmatpush1.msra.mxu0 %v382
    %434 = vmatprep.subr.mxu0 0.0
    %435 = vmatpush2.msra.mxu0 0.0
    %436 = vmatprep.subr.mxu0 0.0
    %437 = vmatpush2.msra.mxu0 0.0
    %438 = vmatprep.subr.mxu0 0.0
    %439 = vmatpush2.msra.mxu0 0.0
    %440 = vmatprep.subr.mxu0 0.0
    %441 = vmatpush2.msra.mxu0 0.0
    %442 = vmatprep.subr.mxu0 0.0
    %443 = vmatpush2.msra.mxu0 0.0
    %444 = vmatprep.subr.mxu0 0.0
    %445 = vmatpush2.msra.mxu0 0.0
    %446 = vmatprep.subr.mxu0 0.0
    %447 = vmatpush2.msra.mxu0 0.0
    %448 = vmatprep.subr.mxu0 0.0
    %449 = vmatpush2.msra.mxu0 0.0
    %450 = vmatprep.subr.mxu0 0.0
    %451 = vmatpush2.msra.mxu0 0.0
    %452 = vmatprep.subr.mxu0 0.0
    %453 = vmatpush2.msra.mxu0 0.0
    %454 = vmatprep.subr.mxu0 0.0
    %455 = vmatpush2.msra.mxu0 0.0
    %456 = vmatprep.subr.mxu0 0.0
    %457 = vmatpush2.msra.mxu0 0.0
    %458 = vmatprep.subr.mxu0 0.0
    %459 = vmatpush2.msra.mxu0 0.0
    %460 = vmatprep.subr.mxu0 0.0
    %461 = vmatpush2.msra.mxu0 0.0
    %462 = vmatprep.subr.mxu0 0.0
    %463 = vmatpush2.msra.mxu0 0.0
    %464 = vmatprep.subr.mxu0 0.0
    %465 = vmatpush2.msra.mxu0 0.0
    %466 = vmatprep.mubr.f32.mxu0 0.0
    %467 = vmatmul.mubr.f32.gmra.mxu0 %v381
    %v468 = vpop.f32.mrf.mxu0
    %v469 = vadd.f32 %v401, %v468
    %v470 = vpop.f32.mrf.mxu0
    %471 = vdwg.mxu0
    %v472 = vmax.f32 %v469, 0.0
    %v473 = vld [vmem:[#allocation11] sm:$0xff]
    %v474 = vld [vmem:[#allocation11 + $0x8] sm:$0xff]
    %v475 = vld [vmem:[#allocation11 + $0x10] sm:$0xff]
    %v476 = vld [vmem:[#allocation11 + $0x18] sm:$0xff]
    %v477 = vld [vmem:[#allocation11 + $0x20] sm:$0xff]
    %v478 = vld [vmem:[#allocation11 + $0x28] sm:$0xff]
    %v479 = vld [vmem:[#allocation11 + $0x30] sm:$0xff]
    %v480 = vld [vmem:[#allocation11 + $0x38] sm:$0xff]
    %v481 = vld [vmem:[#allocation11 + $0x40] sm:$0xff]
    %v482 = vld [vmem:[#allocation11 + $0x48] sm:$0xff]
    %v483 = vld [vmem:[#allocation11 + $0x50] sm:$0xff]
    %v484 = vld [vmem:[#allocation11 + $0x58] sm:$0xff]
    %v485 = vld [vmem:[#allocation11 + $0x60] sm:$0xff]
    %v486 = vld [vmem:[#allocation11 + $0x68] sm:$0xff]
    %v487 = vld [vmem:[#allocation11 + $0x70] sm:$0xff]
    %v488 = vld [vmem:[#allocation11 + $0x78] sm:$0xff]
    %v489 = vlaneseq
    %v490 = vshrl.u32 %v489, 7
    %v491 = vsub.s32 4, %v490
    %v492 = vrot.slane %v107, %v491
    %493 = vmatprep.subr.mxu0 0.0
    %494 = vmatpush1.msra.mxu0 %v488
    %495 = vmatprep.subr.mxu0 0.0
    %496 = vmatpush1.msra.mxu0 %v487
    %497 = vmatprep.subr.mxu0 0.0
    %498 = vmatpush1.msra.mxu0 %v486
    %499 = vmatprep.subr.mxu0 0.0
    %500 = vmatpush1.msra.mxu0 %v485
    %501 = vmatprep.subr.mxu0 0.0
    %502 = vmatpush1.msra.mxu0 %v484
    %503 = vmatprep.subr.mxu0 0.0
    %504 = vmatpush1.msra.mxu0 %v483
    %505 = vmatprep.subr.mxu0 0.0
    %506 = vmatpush1.msra.mxu0 %v482
    %507 = vmatprep.subr.mxu0 0.0
    %508 = vmatpush1.msra.mxu0 %v481
    %509 = vmatprep.subr.mxu0 0.0
    %510 = vmatpush1.msra.mxu0 %v480
    %511 = vmatprep.subr.mxu0 0.0
    %512 = vmatpush1.msra.mxu0 %v479
    %513 = vmatprep.subr.mxu0 0.0
    %514 = vmatpush1.msra.mxu0 %v478
    %515 = vmatprep.subr.mxu0 0.0
    %516 = vmatpush1.msra.mxu0 %v477
    %517 = vmatprep.subr.mxu0 0.0
    %518 = vmatpush1.msra.mxu0 %v476
    %519 = vmatprep.subr.mxu0 0.0
    %520 = vmatpush1.msra.mxu0 %v475
    %521 = vmatprep.subr.mxu0 0.0
    %522 = vmatpush1.msra.mxu0 %v474
    %523 = vmatprep.subr.mxu0 0.0
    %524 = vmatpush1.msra.mxu0 %v473
    %525 = vmatprep.subr.mxu0 0.0
    %526 = vmatpush2.msra.mxu0 0.0
    %527 = vmatprep.subr.mxu0 0.0
    %528 = vmatpush2.msra.mxu0 0.0
    %529 = vmatprep.subr.mxu0 0.0
    %530 = vmatpush2.msra.mxu0 0.0
    %531 = vmatprep.subr.mxu0 0.0
    %532 = vmatpush2.msra.mxu0 0.0
    %533 = vmatprep.subr.mxu0 0.0
    %534 = vmatpush2.msra.mxu0 0.0
    %535 = vmatprep.subr.mxu0 0.0
    %536 = vmatpush2.msra.mxu0 0.0
    %537 = vmatprep.subr.mxu0 0.0
    %538 = vmatpush2.msra.mxu0 0.0
    %539 = vmatprep.subr.mxu0 0.0
    %540 = vmatpush2.msra.mxu0 0.0
    %541 = vmatprep.subr.mxu0 0.0
    %542 = vmatpush2.msra.mxu0 0.0
    %543 = vmatprep.subr.mxu0 0.0
    %544 = vmatpush2.msra.mxu0 0.0
    %545 = vmatprep.subr.mxu0 0.0
    %546 = vmatpush2.msra.mxu0 0.0
    %547 = vmatprep.subr.mxu0 0.0
    %548 = vmatpush2.msra.mxu0 0.0
    %549 = vmatprep.subr.mxu0 0.0
    %550 = vmatpush2.msra.mxu0 0.0
    %551 = vmatprep.subr.mxu0 0.0
    %552 = vmatpush2.msra.mxu0 0.0
    %553 = vmatprep.subr.mxu0 0.0
    %554 = vmatpush2.msra.mxu0 0.0
    %555 = vmatprep.subr.mxu0 0.0
    %556 = vmatpush2.msra.mxu0 0.0
    %557 = vmatprep.mubr.f32.mxu0 0.0
    %558 = vmatmul.mubr.f32.gmra.mxu0 %v472
    %v559 = vpop.f32.mrf.mxu0
    %v560 = vadd.f32 %v492, %v559
    %v561 = vpop.f32.mrf.mxu0
    %562 = vdwg.mxu0
    %563 = vst [vmem:[#allocation13] sm:$0xff] %v560
    // Predicated region
    $region54: #{tpu_custom_call.1} parent=1 // pred_check
      _
    $region55: #{tpu_custom_call.1} parent=1 // pred_check_branch
      %565 = sbr.rel (0) target = $region57
    $region56: #{tpu_custom_call.1} parent=1 // pred_region
      %s567 = ssub.s32 128, 128
      %568 = vsyncadd [#allocation4], %s567
      %s570 = sshll.u32 [#allocation13], 4
      %s571 = int_to_ptr.vmem [resolvable:$true] %s570
      %573 = dma.vmem_to_hbm [thread:$0]  %s571, 128, %s7, [#allocation4]
    $region57: #{tpu_custom_call.1} parent=1 // pred_fallthru
      _
    // Predicated region
    $region58: #{tpu_custom_call.1} parent=1 // pred_check
      _
    $region59: #{tpu_custom_call.1} parent=1 // pred_check_branch
      %575 = sbr.rel (0) target = $region61
    $region60: #{tpu_custom_call.1} parent=1 // pred_region
      %576 = dma.done [#allocation4], 128
    $region61: #{tpu_custom_call.1} parent=1 // pred_fallthru
      _
    %577 = vsyncpa [#allocation3], 1
    %578 = vsyncpa [#allocation6], 1
    %579 = vsyncpa [#allocation9], 1
    %580 = vsyncpa [#allocation12], 1
    %581 = vsyncpa [#allocation4], 1

</llo_original>
